<compile_context>
chip_gen: v7x
topology: tpu7x:2x2x1
jax: 0.10.0
libtpu: 0.0.40
codegen_flags: <defaults>
</compile_context>

<pallas_src>
import functools
import math

import jax
import jax.numpy as jnp
from jax import lax
from jax.experimental import pallas as pl
from jax.experimental.pallas import tpu as pltpu

_LN_EPS = 1e-5                      # torch.nn.LayerNorm default
_INV_SQRT2 = 1.0 / math.sqrt(2.0)


def _round_up(a, b):
    return ((a + b - 1) // b) * b


def _layer_norm_f32(x, gamma, beta):
    mu = jnp.mean(x, axis=-1, keepdims=True)
    var = jnp.mean(jnp.square(x - mu), axis=-1, keepdims=True)
    return (x - mu) * lax.rsqrt(var + _LN_EPS) * gamma + beta


def _gelu(h, approximate):
    if approximate:
        # tanh form: transcendental goes to the EUP slot (co-issued, near free)
        return jax.nn.gelu(h, approximate=True)
    # exact GELU (matches torch.nn.GELU default): 0.5*x*(1+erf(x/sqrt(2)))
    return 0.5 * h * (1.0 + lax.erf(h * _INV_SQRT2))


# ---------------------------------------------------------------------------
# Kernels
# ---------------------------------------------------------------------------
def _encoder_fused_kernel(x_ref, g1_ref, be1_ref, g2_ref, be2_ref,
                          w1_ref, b1_ref, w2_ref, b2_ref, o_ref,
                          *, approximate_gelu):
    """1-D grid over row tiles; full fc1/fc2 weights resident in VMEM."""
    x = x_ref[...].astype(jnp.float32)                                   # (tm, D)
    x1 = x + _layer_norm_f32(x, g1_ref[...].astype(jnp.float32),
                             be1_ref[...].astype(jnp.float32))
    x2 = _layer_norm_f32(x1, g2_ref[...].astype(jnp.float32),
                         be2_ref[...].astype(jnp.float32))
    # MXU matmuls in the weights' native dtype, f32 accumulation.
    h = jnp.dot(x2.astype(w1_ref.dtype), w1_ref[...],
                preferred_element_type=jnp.float32)
    h = h + b1_ref[...].astype(jnp.float32)
    h = _gelu(h, approximate_gelu)
    # dropout(p=0.0) is the identity.
    # TODO(synk): dropout with p > 0 would need pltpu.prng_seed/prng_random_bits.
    y = jnp.dot(h.astype(w2_ref.dtype), w2_ref[...],
                preferred_element_type=jnp.float32)
    y = y + b2_ref[...].astype(jnp.float32)
    o_ref[...] = (y + x1).astype(o_ref.dtype)


def _encoder_ktiled_kernel(x_ref, g1_ref, be1_ref, g2_ref, be2_ref,
                           w1_ref, b1_ref, w2_ref, b2_ref, o_ref,
                           x1_sc, x2_sc, acc_sc, *, approximate_gelu):
    """Fallback: 2-D grid (row tiles [parallel], hidden-dim chunks [arbitrary])."""
    k = pl.program_id(1)

    @pl.when(k == 0)
    def _init():
        x = x_ref[...].astype(jnp.float32)                               # (tm, D)
        x1 = x + _layer_norm_f32(x, g1_ref[...].astype(jnp.float32),
                                 be1_ref[...].astype(jnp.float32))
        x1_sc[...] = x1
        # Store the mlp_norm output pre-cast to the matmul operand dtype.
        x2_sc[...] = _layer_norm_f32(x1, g2_ref[...].astype(jnp.float32),
                                     be2_ref[...].astype(jnp.float32)
                                     ).astype(x2_sc.dtype)
        acc_sc[...] = jnp.zeros_like(acc_sc)

    # fc1 on this hidden-dim chunk (contraction over D is complete -> GELU exact).
    h = jnp.dot(x2_sc[...], w1_ref[...], preferred_element_type=jnp.float32)
    h = h + b1_ref[...].astype(jnp.float32)
    h = _gelu(h, approximate_gelu)
    # fc2 partial product over this hidden-dim chunk, accumulated in f32.
    acc_sc[...] += jnp.dot(h.astype(w2_ref.dtype), w2_ref[...],
                           preferred_element_type=jnp.float32)

    @pl.when(k == pl.num_programs(1) - 1)
    def _finalize():
        out = acc_sc[...] + b2_ref[...].astype(jnp.float32) + x1_sc[...]
        o_ref[...] = out.astype(o_ref.dtype)


# ---------------------------------------------------------------------------
# Tiling / VMEM sizing helpers
# ---------------------------------------------------------------------------
def _vmem_cap_bytes():
    """Usable scoped-VMEM budget for this chip (physical minus headroom)."""
    phys = 64 * 1024 * 1024            # conservative default (v7x)
    try:
        info = pltpu.get_tpu_info()
        v = getattr(info, "vmem_capacity_bytes", None)
        if v:
            phys = int(v)
    except Exception:
        pass
    return max(min(phys - (8 << 20), (phys * 7) // 8), 16 << 20)


def _est_fused(tm, D, H, x_it, w_it):
    est = 2 * 2 * D * H * w_it               # fc1 + fc2 weights (double-buffered specs)
    est += 2 * 2 * tm * D * x_it             # input + output row tiles (double-buffered)
    est += tm * H * (4 + w_it)               # hidden activation f32 + cast copy
    est += 4 * tm * D * 4                    # x1/x2/y f32 temporaries
    est += 8 * (D + H) * 4                   # LN params + biases (tiny)
    return est


def _est_ktiled(tm, tH, D, H, x_it, w_it):
    est = 2 * 2 * D * tH * w_it              # fc1/fc2 weight slabs (double-buffered)
    est += 2 * 2 * tm * D * x_it             # input + output row tiles
    est += 2 * tm * D * 4 + tm * D * w_it    # x1 / acc f32 scratch + x2 scratch (w dtype)
    est += tm * tH * (4 + w_it)              # hidden activation f32 + cast copy
    est += 8 * (D + tH) * 4
    return est


def _choose_ktiled(tm0, sub, D, H, x_it, w_it, cap, max_th=None):
    """Pick (tm, tH) for the fallback path: prefer big tm, then big tH, under cap."""
    if H % 128 == 0:
        th_cands = [t for t in range(H, 127, -128) if H % t == 0]
    else:
        th_cands = [H]
    if max_th is not None:
        filtered = [t for t in th_cands if t <= max_th]
        if filtered:
            th_cands = filtered
    tm = tm0
    while True:
        for tH in th_cands:
            if _est_ktiled(tm, tH, D, H, x_it, w_it) <= cap:
                return tm, tH
        if tm <= sub:
            break
        tm = max(_round_up(tm // 2, sub), sub)
    # Last resort: smallest tiles (vmem limit will be clamped at cap).
    return sub, th_cands[-1]


# ---------------------------------------------------------------------------
# Wrapper
# ---------------------------------------------------------------------------
def encoder_pallas(x, g1, be1, g2, be2, w1, b1, w2, b2, *,
                   tm=512, approximate_gelu=False, compute_dtype=None,
                   force_ktiled=False, max_th=None):
    """x: (B, N, D). g1/be1/g2/be2: (D,). w1: (D, H), b1: (H,), w2: (H, D), b2: (D,)."""
    B, N, D = x.shape
    H = w1.shape[1]
    M = B * N

    if compute_dtype is not None:
        # Opt-in fast path: bf16 operands, f32 accumulation inside the kernel.
        w1 = w1.astype(compute_dtype)
        w2 = w2.astype(compute_dtype)

    x_it = jnp.dtype(x.dtype).itemsize
    w_it = jnp.dtype(w1.dtype).itemsize
    sub = {1: 32, 2: 16}.get(x_it, 8)        # dtype-dependent sublane multiple

    # Row tile: big (MXU-filling), sublane-aligned, never larger than the problem.
    tm = _round_up(max(tm, sub), sub)
    M_sub = _round_up(M, sub)
    tm_eff = min(tm, M_sub)
    num_m = pl.cdiv(M, tm_eff)
    # Keep >= 2 row tiles when there is enough work so v7x's two TensorCores can
    # shard the parallel axis.
    if num_m == 1 and M_sub >= 2 * 128:
        tm_eff = _round_up((M_sub + 1) // 2, sub)
        num_m = pl.cdiv(M, tm_eff)

    cap = _vmem_cap_bytes()
    use_fused = (not force_ktiled) and _est_fused(tm_eff, D, H, x_it, w_it) <= cap

    if not use_fused:
        tm_eff, tH = _choose_ktiled(tm_eff, sub, D, H, x_it, w_it, cap, max_th=max_th)
        num_m = pl.cdiv(M, tm_eff)
        num_h = pl.cdiv(H, tH)

    M_pad = num_m * tm_eff
    x2d = x.reshape(M, D)
    if M_pad != M:
        x2d = jnp.pad(x2d, ((0, M_pad - M), (0, 0)))

    g1r, be1r = g1.reshape(1, D), be1.reshape(1, D)
    g2r, be2r = g2.reshape(1, D), be2.reshape(1, D)
    b1r, b2r = b1.reshape(1, H), b2.reshape(1, D)

    if use_fused:
        est = _est_fused(tm_eff, D, H, x_it, w_it)
        vmem_limit = int(min(max(est + (8 << 20), 32 << 20), cap))
        kernel = functools.partial(_encoder_fused_kernel,
                                   approximate_gelu=approximate_gelu)
        out = pl.pallas_call(
            kernel,
            out_shape=jax.ShapeDtypeStruct((M_pad, D), x.dtype),
            grid_spec=pltpu.PrefetchScalarGridSpec(
                num_scalar_prefetch=0,
                grid=(num_m,),
                in_specs=[
                    pl.BlockSpec((tm_eff, D), lambda i: (i, 0)),   # x row tile
                    pl.BlockSpec((1, D), lambda i: (0, 0)),        # attn_norm gamma
                    pl.BlockSpec((1, D), lambda i: (0, 0)),        # attn_norm beta
                    pl.BlockSpec((1, D), lambda i: (0, 0)),        # mlp_norm gamma
                    pl.BlockSpec((1, D), lambda i: (0, 0)),        # mlp_norm beta
                    pl.BlockSpec((D, H), lambda i: (0, 0)),        # fc1 weight (resident)
                    pl.BlockSpec((1, H), lambda i: (0, 0)),        # fc1 bias
                    pl.BlockSpec((H, D), lambda i: (0, 0)),        # fc2 weight (resident)
                    pl.BlockSpec((1, D), lambda i: (0, 0)),        # fc2 bias
                ],
                out_specs=pl.BlockSpec((tm_eff, D), lambda i: (i, 0)),
            ),
            compiler_params=pltpu.CompilerParams(
                dimension_semantics=("parallel",),
                vmem_limit_bytes=vmem_limit),
        )(x2d, g1r, be1r, g2r, be2r, w1, b1r, w2, b2r)
    else:
        est = _est_ktiled(tm_eff, tH, D, H, x_it, w_it)
        vmem_limit = int(min(max(est + (8 << 20), 32 << 20), cap))
        kernel = functools.partial(_encoder_ktiled_kernel,
                                   approximate_gelu=approximate_gelu)
        out = pl.pallas_call(
            kernel,
            out_shape=jax.ShapeDtypeStruct((M_pad, D), x.dtype),
            grid_spec=pltpu.PrefetchScalarGridSpec(
                num_scalar_prefetch=0,
                grid=(num_m, num_h),
                in_specs=[
                    pl.BlockSpec((tm_eff, D), lambda i, k: (i, 0)),  # x row tile
                    pl.BlockSpec((1, D), lambda i, k: (0, 0)),       # attn_norm gamma
                    pl.BlockSpec((1, D), lambda i, k: (0, 0)),       # attn_norm beta
                    pl.BlockSpec((1, D), lambda i, k: (0, 0)),       # mlp_norm gamma
                    pl.BlockSpec((1, D), lambda i, k: (0, 0)),       # mlp_norm beta
                    pl.BlockSpec((D, tH), lambda i, k: (0, k)),      # fc1 weight slab
                    pl.BlockSpec((1, tH), lambda i, k: (0, k)),      # fc1 bias chunk
                    pl.BlockSpec((tH, D), lambda i, k: (k, 0)),      # fc2 weight slab
                    pl.BlockSpec((1, D), lambda i, k: (0, 0)),       # fc2 bias
                ],
                out_specs=pl.BlockSpec((tm_eff, D), lambda i, k: (i, 0)),
                scratch_shapes=[
                    pltpu.VMEM((tm_eff, D), jnp.float32),   # x1 (residual) scratch
                    pltpu.VMEM((tm_eff, D), w1.dtype),      # mlp_norm output (pre-cast)
                    pltpu.VMEM((tm_eff, D), jnp.float32),   # fc2 accumulator
                ],
            ),
            compiler_params=pltpu.CompilerParams(
                dimension_semantics=("parallel", "arbitrary"),
                vmem_limit_bytes=vmem_limit),
        )(x2d, g1r, be1r, g2r, be2r, w1, b1r, w2, b2r)

    return out[:M].reshape(B, N, D)


# ---------------------------------------------------------------------------
# Pure-JAX reference + test harness
# ---------------------------------------------------------------------------
def encoder_reference(x, g1, be1, g2, be2, w1, b1, w2, b2):
    def ln(t, g, b):
        mu = jnp.mean(t, axis=-1, keepdims=True)
        var = jnp.mean(jnp.square(t - mu), axis=-1, keepdims=True)
        return (t - mu) * lax.rsqrt(var + _LN_EPS) * g + b

    h0 = x
    x1 = ln(x, g1, be1) + h0                       # identity attention + residual
    y = ln(x1, g2, be2)
    y = jnp.dot(y, w1) + b1
    y = 0.5 * y * (1.0 + lax.erf(y * _INV_SQRT2))  # exact GELU
    y = jnp.dot(y, w2) + b2
    return y + x1


def _make_params(key, D, H, dtype=jnp.float32):
    ks = jax.random.split(key, 9)
    x_key = ks[0]
    g1 = 1.0 + 0.1 * jax.random.normal(ks[1], (D,), dtype)
    be1 = 0.1 * jax.random.normal(ks[2], (D,), dtype)
    g2 = 1.0 + 0.1 * jax.random.normal(ks[3], (D,), dtype)
    be2 = 0.1 * jax.random.normal(ks[4], (D,), dtype)
    lim1, lim2 = 1.0 / math.sqrt(D), 1.0 / math.sqrt(H)
    w1 = jax.random.uniform(ks[5], (D, H), minval=-lim1, maxval=lim1, dtype=dtype)
    b1 = jax.random.uniform(ks[6], (H,), minval=-lim1, maxval=lim1, dtype=dtype)
    w2 = jax.random.uniform(ks[7], (H, D), minval=-lim2, maxval=lim2, dtype=dtype)
    b2 = jax.random.uniform(ks[8], (D,), minval=-lim2, maxval=lim2, dtype=dtype)
    return x_key, (g1, be1, g2, be2, w1, b1, w2, b2)


if __name__ == "__main__":
    # Small ViT-like shapes: batch=2, seq=8, embed_dim=32, mlp_ratio=4 -> hidden=128
    B, N, D = 2, 8, 32
    H = int(D * 4.0)

    x_key, params = _make_params(jax.random.PRNGKey(0), D, H)
    x = jax.random.normal(x_key, (B, N, D), dtype=jnp.float32)

    out = jax.block_until_ready(encoder_pallas(x, *params))
    ref = encoder_reference(x, *params)
    assert out.shape == (B, N, D)
    assert jnp.allclose(out, ref, atol=2e-3, rtol=2e-3), "mismatch vs reference"

    # Padding path: B*N not a multiple of the sublane tile.
    B2, N2 = 3, 7
    x2 = jax.random.normal(jax.random.PRNGKey(1), (B2, N2, D), dtype=jnp.float32)
    out2 = jax.block_until_ready(encoder_pallas(x2, *params))
    ref2 = encoder_reference(x2, *params)
    assert out2.shape == (B2, N2, D)
    assert jnp.allclose(out2, ref2, atol=2e-3, rtol=2e-3), "mismatch vs reference (padded)"

    # Forced k-tiled fallback path with hidden-dim accumulation over 2 chunks
    # (exercises the accumulator kernel that is used when weights exceed VMEM).
    D3 = 64
    H3 = int(D3 * 4.0)
    x3_key, params3 = _make_params(jax.random.PRNGKey(2), D3, H3)
    x3 = jax.random.normal(x3_key, (2, 8, D3), dtype=jnp.float32)
    out3 = jax.block_until_ready(
        encoder_pallas(x3, *params3, force_ktiled=True, max_th=128))
    ref3 = encoder_reference(x3, *params3)
    assert out3.shape == (2, 8, D3)
    assert jnp.allclose(out3, ref3, atol=2e-3, rtol=2e-3), "mismatch vs reference (ktiled)"

    print("KERNEL_OK")
</pallas_src>

<mosaic_0001>
module attributes {stable_mosaic.version = 11 : i64} {
  func.func @_encoder_fused_kernel(%arg0: i32, %arg1: memref<16x32xf32, #tpu.memory_space<vmem>>, %arg2: memref<1x32xf32, #tpu.memory_space<vmem>>, %arg3: memref<1x32xf32, #tpu.memory_space<vmem>>, %arg4: memref<1x32xf32, #tpu.memory_space<vmem>>, %arg5: memref<1x32xf32, #tpu.memory_space<vmem>>, %arg6: memref<32x128xf32, #tpu.memory_space<vmem>>, %arg7: memref<1x128xf32, #tpu.memory_space<vmem>>, %arg8: memref<128x32xf32, #tpu.memory_space<vmem>>, %arg9: memref<1x32xf32, #tpu.memory_space<vmem>>, %arg10: memref<16x32xf32, #tpu.memory_space<vmem>>) attributes {dimension_semantics = [#tpu.dimension_semantics<parallel>], iteration_bounds = array<i64: 1>, scalar_prefetch = 0 : i64, scratch_operands = 0 : i64, tpu.core_type = #tpu.core_type<tc>, window_params = [{transform_indices = @transform_0, window_bounds = array<i64: 16, 32>}, {pipeline_mode = #tpu.pipeline_mode<synchronous>, transform_indices = @transform_1, window_bounds = array<i64: 1, 32>}, {pipeline_mode = #tpu.pipeline_mode<synchronous>, transform_indices = @transform_2, window_bounds = array<i64: 1, 32>}, {pipeline_mode = #tpu.pipeline_mode<synchronous>, transform_indices = @transform_3, window_bounds = array<i64: 1, 32>}, {pipeline_mode = #tpu.pipeline_mode<synchronous>, transform_indices = @transform_4, window_bounds = array<i64: 1, 32>}, {pipeline_mode = #tpu.pipeline_mode<synchronous>, transform_indices = @transform_5, window_bounds = array<i64: 32, 128>}, {pipeline_mode = #tpu.pipeline_mode<synchronous>, transform_indices = @transform_6, window_bounds = array<i64: 1, 128>}, {pipeline_mode = #tpu.pipeline_mode<synchronous>, transform_indices = @transform_7, window_bounds = array<i64: 128, 32>}, {pipeline_mode = #tpu.pipeline_mode<synchronous>, transform_indices = @transform_8, window_bounds = array<i64: 1, 32>}, {transform_indices = @transform_9, window_bounds = array<i64: 16, 32>}]} {
    %c0 = arith.constant 0 : index
    %c0_0 = arith.constant 0 : index
    %0 = vector.load %arg1[%c0, %c0_0] : memref<16x32xf32, #tpu.memory_space<vmem>>, vector<16x32xf32>
    %c0_1 = arith.constant 0 : index
    %c0_2 = arith.constant 0 : index
    %1 = vector.load %arg2[%c0_1, %c0_2] : memref<1x32xf32, #tpu.memory_space<vmem>>, vector<1x32xf32>
    %c0_3 = arith.constant 0 : index
    %c0_4 = arith.constant 0 : index
    %2 = vector.load %arg3[%c0_3, %c0_4] : memref<1x32xf32, #tpu.memory_space<vmem>>, vector<1x32xf32>
    %cst = arith.constant dense<0.000000e+00> : vector<16xf32>
    %3 = vector.multi_reduction <add>, %0, %cst [1] : vector<16x32xf32> to vector<16xf32>
    %4 = vector.shape_cast %3 : vector<16xf32> to vector<16x1xf32>
    %cst_5 = arith.constant 3.200000e+01 : f32
    %5 = vector.broadcast %cst_5 : f32 to vector<16x1xf32>
    %6 = arith.divf %4, %5 : vector<16x1xf32>
    %7 = vector.broadcast %6 : vector<16x1xf32> to vector<16x32xf32>
    %8 = arith.subf %0, %7 : vector<16x32xf32>
    %9 = arith.mulf %8, %8 : vector<16x32xf32>
    %cst_6 = arith.constant dense<0.000000e+00> : vector<16xf32>
    %10 = vector.multi_reduction <add>, %9, %cst_6 [1] : vector<16x32xf32> to vector<16xf32>
    %11 = vector.shape_cast %10 : vector<16xf32> to vector<16x1xf32>
    %cst_7 = arith.constant 3.200000e+01 : f32
    %12 = vector.broadcast %cst_7 : f32 to vector<16x1xf32>
    %13 = arith.divf %11, %12 : vector<16x1xf32>
    %14 = vector.broadcast %6 : vector<16x1xf32> to vector<16x32xf32>
    %15 = arith.subf %0, %14 : vector<16x32xf32>
    %cst_8 = arith.constant 9.99999974E-6 : f32
    %16 = vector.broadcast %cst_8 : f32 to vector<16x1xf32>
    %17 = arith.addf %13, %16 : vector<16x1xf32>
    %18 = math.rsqrt %17 : vector<16x1xf32>
    %19 = vector.broadcast %18 : vector<16x1xf32> to vector<16x32xf32>
    %20 = arith.mulf %15, %19 : vector<16x32xf32>
    %21 = vector.broadcast %1 : vector<1x32xf32> to vector<16x32xf32>
    %22 = arith.mulf %20, %21 : vector<16x32xf32>
    %23 = vector.broadcast %2 : vector<1x32xf32> to vector<16x32xf32>
    %24 = arith.addf %22, %23 : vector<16x32xf32>
    %25 = arith.addf %0, %24 : vector<16x32xf32>
    %c0_9 = arith.constant 0 : index
    %c0_10 = arith.constant 0 : index
    %26 = vector.load %arg4[%c0_9, %c0_10] : memref<1x32xf32, #tpu.memory_space<vmem>>, vector<1x32xf32>
    %c0_11 = arith.constant 0 : index
    %c0_12 = arith.constant 0 : index
    %27 = vector.load %arg5[%c0_11, %c0_12] : memref<1x32xf32, #tpu.memory_space<vmem>>, vector<1x32xf32>
    %cst_13 = arith.constant dense<0.000000e+00> : vector<16xf32>
    %28 = vector.multi_reduction <add>, %25, %cst_13 [1] : vector<16x32xf32> to vector<16xf32>
    %29 = vector.shape_cast %28 : vector<16xf32> to vector<16x1xf32>
    %cst_14 = arith.constant 3.200000e+01 : f32
    %30 = vector.broadcast %cst_14 : f32 to vector<16x1xf32>
    %31 = arith.divf %29, %30 : vector<16x1xf32>
    %32 = vector.broadcast %31 : vector<16x1xf32> to vector<16x32xf32>
    %33 = arith.subf %25, %32 : vector<16x32xf32>
    %34 = arith.mulf %33, %33 : vector<16x32xf32>
    %cst_15 = arith.constant dense<0.000000e+00> : vector<16xf32>
    %35 = vector.multi_reduction <add>, %34, %cst_15 [1] : vector<16x32xf32> to vector<16xf32>
    %36 = vector.shape_cast %35 : vector<16xf32> to vector<16x1xf32>
    %cst_16 = arith.constant 3.200000e+01 : f32
    %37 = vector.broadcast %cst_16 : f32 to vector<16x1xf32>
    %38 = arith.divf %36, %37 : vector<16x1xf32>
    %39 = vector.broadcast %31 : vector<16x1xf32> to vector<16x32xf32>
    %40 = arith.subf %25, %39 : vector<16x32xf32>
    %cst_17 = arith.constant 9.99999974E-6 : f32
    %41 = vector.broadcast %cst_17 : f32 to vector<16x1xf32>
    %42 = arith.addf %38, %41 : vector<16x1xf32>
    %43 = math.rsqrt %42 : vector<16x1xf32>
    %44 = vector.broadcast %43 : vector<16x1xf32> to vector<16x32xf32>
    %45 = arith.mulf %40, %44 : vector<16x32xf32>
    %46 = vector.broadcast %26 : vector<1x32xf32> to vector<16x32xf32>
    %47 = arith.mulf %45, %46 : vector<16x32xf32>
    %48 = vector.broadcast %27 : vector<1x32xf32> to vector<16x32xf32>
    %49 = arith.addf %47, %48 : vector<16x32xf32>
    %c0_18 = arith.constant 0 : index
    %c0_19 = arith.constant 0 : index
    %50 = vector.load %arg6[%c0_18, %c0_19] : memref<32x128xf32, #tpu.memory_space<vmem>>, vector<32x128xf32>
    %cst_20 = arith.constant dense<0.000000e+00> : vector<16x128xf32>
    %51 = tpu.matmul %49, %50, %cst_20 {dimension_numbers = #tpu.dot_dimension_numbers<[1], [0], [0], [1], [0, 0, 1, 1], [], []>} : vector<16x32xf32>, vector<32x128xf32>, vector<16x128xf32> -> vector<16x128xf32>
    %c0_21 = arith.constant 0 : index
    %c0_22 = arith.constant 0 : index
    %52 = vector.load %arg7[%c0_21, %c0_22] : memref<1x128xf32, #tpu.memory_space<vmem>>, vector<1x128xf32>
    %53 = vector.broadcast %52 : vector<1x128xf32> to vector<16x128xf32>
    %54 = arith.addf %51, %53 : vector<16x128xf32>
    %cst_23 = arith.constant 5.000000e-01 : f32
    %55 = vector.broadcast %cst_23 : f32 to vector<16x128xf32>
    %56 = arith.mulf %55, %54 : vector<16x128xf32>
    %cst_24 = arith.constant 0.707106769 : f32
    %57 = vector.broadcast %cst_24 : f32 to vector<16x128xf32>
    %58 = arith.mulf %54, %57 : vector<16x128xf32>
    %59 = math.erf %58 : vector<16x128xf32>
    %cst_25 = arith.constant 1.000000e+00 : f32
    %60 = vector.broadcast %cst_25 : f32 to vector<16x128xf32>
    %61 = arith.addf %60, %59 : vector<16x128xf32>
    %62 = arith.mulf %56, %61 : vector<16x128xf32>
    %c0_26 = arith.constant 0 : index
    %c0_27 = arith.constant 0 : index
    %63 = vector.load %arg8[%c0_26, %c0_27] : memref<128x32xf32, #tpu.memory_space<vmem>>, vector<128x32xf32>
    %cst_28 = arith.constant dense<0.000000e+00> : vector<16x32xf32>
    %64 = tpu.matmul %62, %63, %cst_28 {dimension_numbers = #tpu.dot_dimension_numbers<[1], [0], [0], [1], [0, 0, 1, 1], [], []>} : vector<16x128xf32>, vector<128x32xf32>, vector<16x32xf32> -> vector<16x32xf32>
    %c0_29 = arith.constant 0 : index
    %c0_30 = arith.constant 0 : index
    %65 = vector.load %arg9[%c0_29, %c0_30] : memref<1x32xf32, #tpu.memory_space<vmem>>, vector<1x32xf32>
    %66 = vector.broadcast %65 : vector<1x32xf32> to vector<16x32xf32>
    %67 = arith.addf %64, %66 : vector<16x32xf32>
    %68 = arith.addf %67, %25 : vector<16x32xf32>
    %c0_31 = arith.constant 0 : index
    %c0_32 = arith.constant 0 : index
    %69 = vector.load %arg10[%c0_31, %c0_32] : memref<16x32xf32, #tpu.memory_space<vmem>>, vector<16x32xf32>
    tpu.vector_store %arg10[%c0_31, %c0_32], %68 {strides = array<i32>} : memref<16x32xf32, #tpu.memory_space<vmem>>, vector<16x32xf32>,
    return
  }
  func.func @transform_0(%arg0: i32) -> (i32, i32) {
    %c0_i32 = arith.constant 0 : i32
    %c0_i32_0 = arith.constant 0 : i32
    return %arg0, %c0_i32 : i32, i32
  }
  func.func @transform_1(%arg0: i32) -> (i32, i32) {
    %c0_i32 = arith.constant 0 : i32
    %c0_i32_0 = arith.constant 0 : i32
    %c0_i32_1 = arith.constant 0 : i32
    return %c0_i32, %c0_i32_0 : i32, i32
  }
  func.func @transform_2(%arg0: i32) -> (i32, i32) {
    %c0_i32 = arith.constant 0 : i32
    %c0_i32_0 = arith.constant 0 : i32
    %c0_i32_1 = arith.constant 0 : i32
    return %c0_i32, %c0_i32_0 : i32, i32
  }
  func.func @transform_3(%arg0: i32) -> (i32, i32) {
    %c0_i32 = arith.constant 0 : i32
    %c0_i32_0 = arith.constant 0 : i32
    %c0_i32_1 = arith.constant 0 : i32
    return %c0_i32, %c0_i32_0 : i32, i32
  }
  func.func @transform_4(%arg0: i32) -> (i32, i32) {
    %c0_i32 = arith.constant 0 : i32
    %c0_i32_0 = arith.constant 0 : i32
    %c0_i32_1 = arith.constant 0 : i32
    return %c0_i32, %c0_i32_0 : i32, i32
  }
  func.func @transform_5(%arg0: i32) -> (i32, i32) {
    %c0_i32 = arith.constant 0 : i32
    %c0_i32_0 = arith.constant 0 : i32
    %c0_i32_1 = arith.constant 0 : i32
    return %c0_i32, %c0_i32_0 : i32, i32
  }
  func.func @transform_6(%arg0: i32) -> (i32, i32) {
    %c0_i32 = arith.constant 0 : i32
    %c0_i32_0 = arith.constant 0 : i32
    %c0_i32_1 = arith.constant 0 : i32
    return %c0_i32, %c0_i32_0 : i32, i32
  }
  func.func @transform_7(%arg0: i32) -> (i32, i32) {
    %c0_i32 = arith.constant 0 : i32
    %c0_i32_0 = arith.constant 0 : i32
    %c0_i32_1 = arith.constant 0 : i32
    return %c0_i32, %c0_i32_0 : i32, i32
  }
  func.func @transform_8(%arg0: i32) -> (i32, i32) {
    %c0_i32 = arith.constant 0 : i32
    %c0_i32_0 = arith.constant 0 : i32
    %c0_i32_1 = arith.constant 0 : i32
    return %c0_i32, %c0_i32_0 : i32, i32
  }
  func.func @transform_9(%arg0: i32) -> (i32, i32) {
    %c0_i32 = arith.constant 0 : i32
    %c0_i32_0 = arith.constant 0 : i32
    return %arg0, %c0_i32 : i32, i32
  }
}

</mosaic_0001>

<llo_original>
// kernel: tpu_custom_call.1
$region0: #{tpu_custom_call.1}
  #allocation0 [shape = 'u32[]', space=smem, size = 0x4, offset = 0x4, fixed_abs, tag = 'smem constant byte address 0x4 - core index']
  #allocation1 [shape = 'u32[144,128]{1,0:T(1,128)}', space=vmem, size = 0x12000, scoped, tag = 'internal scratch']
  %s0 = inlined_call_operand.vmem [shape: f32[16,32], index: 0, kind: input, shape index: {}]
  %s1 = inlined_call_operand.vmem [shape: f32[1,32], index: 1, kind: input, shape index: {}]
  %s2 = inlined_call_operand.vmem [shape: f32[1,32], index: 2, kind: input, shape index: {}]
  %s3 = inlined_call_operand.vmem [shape: f32[1,32], index: 3, kind: input, shape index: {}]
  %s4 = inlined_call_operand.vmem [shape: f32[1,32], index: 4, kind: input, shape index: {}]
  %s5 = inlined_call_operand.vmem [shape: f32[32,128], index: 5, kind: input, shape index: {}]
  %s6 = inlined_call_operand.vmem [shape: f32[1,128], index: 6, kind: input, shape index: {}]
  %s7 = inlined_call_operand.vmem [shape: f32[128,32], index: 7, kind: input, shape index: {}]
  %s8 = inlined_call_operand.vmem [shape: f32[1,32], index: 8, kind: input, shape index: {}]
  %s9 = inlined_call_operand.hbm [shape: f32[16,32], index: 9, kind: output, shape index: {}]
  %s10 = sld [smem:[#allocation0]]
  $region46: #{tpu_custom_call.1} parent=0
    _
  %s12 = ssub.s32 1, %s10
  %s13 = scalar_select 0, %s12, %s10
  $region1: #{tpu_custom_call.1} parent=0
    #allocation2 [shape = 'u8[8192]{0}', space=vmem, size = 0x2000, scoped, tag = 'output window, operand 0, single buffered']
    #allocation3 [shape = 's32[1]{0}', space=sflag, size = 0x4, scoped, tag = 'scoped memory for tpu_custom_call.1']
    %14 = vsyncpa [#allocation3], 0
    // Predicated region
    $region2: #{tpu_custom_call.1} parent=1 // pred_check
      _
    $region3: #{tpu_custom_call.1} parent=1 // pred_check_branch
      %16 = sbr.rel (0) target = $region5
    $region4: #{tpu_custom_call.1} parent=1 // pred_region
      _
    $region5: #{tpu_custom_call.1} parent=1 // pred_fallthru
      _
    // Predicated region
    $region6: #{tpu_custom_call.1} parent=1 // pred_check
      _
    $region7: #{tpu_custom_call.1} parent=1 // pred_check_branch
      %18 = sbr.rel (0) target = $region9
    $region8: #{tpu_custom_call.1} parent=1 // pred_region
      _
    $region9: #{tpu_custom_call.1} parent=1 // pred_fallthru
      _
    // Predicated region
    $region10: #{tpu_custom_call.1} parent=1 // pred_check
      _
    $region11: #{tpu_custom_call.1} parent=1 // pred_check_branch
      %20 = sbr.rel (0) target = $region13
    $region12: #{tpu_custom_call.1} parent=1 // pred_region
      _
    $region13: #{tpu_custom_call.1} parent=1 // pred_fallthru
      _
    // Predicated region
    $region14: #{tpu_custom_call.1} parent=1 // pred_check
      _
    $region15: #{tpu_custom_call.1} parent=1 // pred_check_branch
      %22 = sbr.rel (0) target = $region17
    $region16: #{tpu_custom_call.1} parent=1 // pred_region
      _
    $region17: #{tpu_custom_call.1} parent=1 // pred_fallthru
      _
    // Predicated region
    $region18: #{tpu_custom_call.1} parent=1 // pred_check
      _
    $region19: #{tpu_custom_call.1} parent=1 // pred_check_branch
      %24 = sbr.rel (0) target = $region21
    $region20: #{tpu_custom_call.1} parent=1 // pred_region
      _
    $region21: #{tpu_custom_call.1} parent=1 // pred_fallthru
      _
    // Predicated region
    $region22: #{tpu_custom_call.1} parent=1 // pred_check
      _
    $region23: #{tpu_custom_call.1} parent=1 // pred_check_branch
      %26 = sbr.rel (0) target = $region25
    $region24: #{tpu_custom_call.1} parent=1 // pred_region
      _
    $region25: #{tpu_custom_call.1} parent=1 // pred_fallthru
      _
    // Predicated region
    $region26: #{tpu_custom_call.1} parent=1 // pred_check
      _
    $region27: #{tpu_custom_call.1} parent=1 // pred_check_branch
      %28 = sbr.rel (0) target = $region29
    $region28: #{tpu_custom_call.1} parent=1 // pred_region
      _
    $region29: #{tpu_custom_call.1} parent=1 // pred_fallthru
      _
    // Predicated region
    $region30: #{tpu_custom_call.1} parent=1 // pred_check
      _
    $region31: #{tpu_custom_call.1} parent=1 // pred_check_branch
      %30 = sbr.rel (0) target = $region33
    $region32: #{tpu_custom_call.1} parent=1 // pred_region
      _
    $region33: #{tpu_custom_call.1} parent=1 // pred_fallthru
      _
    // Predicated region
    $region34: #{tpu_custom_call.1} parent=1 // pred_check
      _
    $region35: #{tpu_custom_call.1} parent=1 // pred_check_branch
      %32 = sbr.rel (0) target = $region37
    $region36: #{tpu_custom_call.1} parent=1 // pred_region
      _
    $region37: #{tpu_custom_call.1} parent=1 // pred_fallthru
      _
    %v33 = vld [vmem:[%s0] sm:$0xff]
    %v34 = vld [vmem:[%s0 + $0x8] sm:$0xff]
    %v35 = vld [vmem:[%s1] sm:$0x1]
    %v36 = vld [vmem:[%s2] sm:$0x1]
    %vm37 = vcmask 261120
    %v38 = vsel %vm37, %v33, 0.0
    %39 = vadd.xlane.f32.xlu0 %v38
    %v40 = vpop.xlane.xlu0 %39
    %v41 = vsel %vm37, %v34, 0.0
    %42 = vadd.xlane.f32.xlu0 %v41
    %v43 = vpop.xlane.xlu0 %42
    %v44 = vrcp.pop 32.0
    %v45 = vmul.f32 %v40, %v44
    %v46 = vmul.f32 %v43, %v44
    %v47 = vsub.f32 %v33, %v45
    %v48 = vsub.f32 %v34, %v46
    %v49 = vmul.f32 %v47, %v47
    %v50 = vmul.f32 %v48, %v48
    %v51 = vsel %vm37, %v49, 0.0
    %52 = vadd.xlane.f32.xlu0 %v51
    %v53 = vpop.xlane.xlu0 %52
    %v54 = vsel %vm37, %v50, 0.0
    %55 = vadd.xlane.f32.xlu0 %v54
    %v56 = vpop.xlane.xlu0 %55
    %v57 = vmul.f32 %v53, %v44
    %v58 = vmul.f32 %v56, %v44
    %v59 = vadd.f32 %v57, 1e-05
    %v60 = vadd.f32 %v58, 1e-05
    %v61 = vrsqrt.pop %v59
    %v62 = vrsqrt.pop %v60
    %v63 = vmul.f32 %v47, %v61
    %v64 = vmul.f32 %v48, %v62
    %v66 = vlaneseq
    %v67 = vshrl.u32 %v66, 7
    %v68 = vsub.s32 0, %v67
    %v69 = vrot.slane %v35, %v68
    %v71 = vmul.f32 %v63, %v69
    %v72 = vmul.f32 %v64, %v69
    %v74 = vlaneseq
    %v75 = vshrl.u32 %v74, 7
    %v76 = vsub.s32 0, %v75
    %v77 = vrot.slane %v36, %v76
    %v79 = vadd.f32 %v71, %v77
    %v80 = vadd.f32 %v72, %v77
    %v81 = vadd.f32 %v33, %v79
    %v82 = vadd.f32 %v34, %v80
    %v83 = vld [vmem:[%s3] sm:$0x1]
    %v84 = vld [vmem:[%s4] sm:$0x1]
    %v85 = vsel %vm37, %v81, 0.0
    %86 = vadd.xlane.f32.xlu0 %v85
    %v87 = vpop.xlane.xlu0 %86
    %v88 = vsel %vm37, %v82, 0.0
    %89 = vadd.xlane.f32.xlu0 %v88
    %v90 = vpop.xlane.xlu0 %89
    %v91 = vmul.f32 %v87, %v44
    %v92 = vmul.f32 %v90, %v44
    %v93 = vsub.f32 %v81, %v91
    %v94 = vsub.f32 %v82, %v92
    %v95 = vmul.f32 %v93, %v93
    %v96 = vmul.f32 %v94, %v94
    %v97 = vsel %vm37, %v95, 0.0
    %98 = vadd.xlane.f32.xlu0 %v97
    %v99 = vpop.xlane.xlu0 %98
    %v100 = vsel %vm37, %v96, 0.0
    %101 = vadd.xlane.f32.xlu0 %v100
    %v102 = vpop.xlane.xlu0 %101
    %v103 = vmul.f32 %v99, %v44
    %v104 = vmul.f32 %v102, %v44
    %v105 = vadd.f32 %v103, 1e-05
    %v106 = vadd.f32 %v104, 1e-05
    %v107 = vrsqrt.pop %v105
    %v108 = vrsqrt.pop %v106
    %v109 = vmul.f32 %v93, %v107
    %v110 = vmul.f32 %v94, %v108
    %v112 = vlaneseq
    %v113 = vshrl.u32 %v112, 7
    %v114 = vsub.s32 0, %v113
    %v115 = vrot.slane %v83, %v114
    %v117 = vmul.f32 %v109, %v115
    %v118 = vmul.f32 %v110, %v115
    %v120 = vlaneseq
    %v121 = vshrl.u32 %v120, 7
    %v122 = vsub.s32 0, %v121
    %v123 = vrot.slane %v84, %v122
    %v125 = vadd.f32 %v117, %v123
    %v126 = vadd.f32 %v118, %v123
    %v127 = vld [vmem:[%s5] sm:$0xff]
    %v128 = vld [vmem:[%s5 + $0x8] sm:$0xff]
    %v129 = vld [vmem:[%s5 + $0x10] sm:$0xff]
    %v130 = vld [vmem:[%s5 + $0x18] sm:$0xff]
    %v131 = vld [vmem:[%s6] sm:$0x1]
    %v133 = vlaneseq
    %v134 = vshrl.u32 %v133, 7
    %v135 = vsub.s32 0, %v134
    %v136 = vrot.slane %v131, %v135
    %v139 = vsel %vm37, %v125, 0
    %v142 = vsel %vm37, %v126, 0
    %144 = vmatprep.subr.mxu0 0.0
    %145 = vmatpush1.msra.mxu0 %v127
    %146 = vmatprep.subr.mxu0 0.0
    %147 = vmatpush1.msra.mxu0 %v128
    %148 = vmatprep.subr.mxu0 0.0
    %149 = vmatpush1.msra.mxu0 %v129
    %150 = vmatprep.subr.mxu0 0.0
    %151 = vmatpush1.msra.mxu0 %v130
    %152 = vmatprep.subr.mxu0 0.0
    %153 = vmatpush1.msra.mxu0 0.0
    %154 = vmatprep.subr.mxu0 0.0
    %155 = vmatpush1.msra.mxu0 0.0
    %156 = vmatprep.subr.mxu0 0.0
    %157 = vmatpush1.msra.mxu0 0.0
    %158 = vmatprep.subr.mxu0 0.0
    %159 = vmatpush1.msra.mxu0 0.0
    %160 = vmatprep.subr.mxu0 0.0
    %161 = vmatpush1.msra.mxu0 0.0
    %162 = vmatprep.subr.mxu0 0.0
    %163 = vmatpush1.msra.mxu0 0.0
    %164 = vmatprep.subr.mxu0 0.0
    %165 = vmatpush1.msra.mxu0 0.0
    %166 = vmatprep.subr.mxu0 0.0
    %167 = vmatpush1.msra.mxu0 0.0
    %168 = vmatprep.subr.mxu0 0.0
    %169 = vmatpush1.msra.mxu0 0.0
    %170 = vmatprep.subr.mxu0 0.0
    %171 = vmatpush1.msra.mxu0 0.0
    %172 = vmatprep.subr.mxu0 0.0
    %173 = vmatpush1.msra.mxu0 0.0
    %174 = vmatprep.subr.mxu0 0.0
    %175 = vmatpush1.msra.mxu0 0.0
    %176 = vmatprep.subr.mxu0 0.0
    %177 = vmatpush1.msra.mxu0 0.0
    %178 = vmatprep.subr.mxu0 0.0
    %179 = vmatpush1.msra.mxu0 0.0
    %180 = vmatprep.subr.mxu0 0.0
    %181 = vmatpush1.msra.mxu0 0.0
    %182 = vmatprep.subr.mxu0 0.0
    %183 = vmatpush1.msra.mxu0 0.0
    %184 = vmatprep.subr.mxu0 0.0
    %185 = vmatpush1.msra.mxu0 0.0
    %186 = vmatprep.subr.mxu0 0.0
    %187 = vmatpush1.msra.mxu0 0.0
    %188 = vmatprep.subr.mxu0 0.0
    %189 = vmatpush1.msra.mxu0 0.0
    %190 = vmatprep.subr.mxu0 0.0
    %191 = vmatpush1.msra.mxu0 0.0
    %192 = vmatprep.subr.mxu0 0.0
    %193 = vmatpush1.msra.mxu0 0.0
    %194 = vmatprep.subr.mxu0 0.0
    %195 = vmatpush1.msra.mxu0 0.0
    %196 = vmatprep.subr.mxu0 0.0
    %197 = vmatpush1.msra.mxu0 0.0
    %198 = vmatprep.subr.mxu0 0.0
    %199 = vmatpush1.msra.mxu0 0.0
    %200 = vmatprep.subr.mxu0 0.0
    %201 = vmatpush1.msra.mxu0 0.0
    %202 = vmatprep.subr.mxu0 0.0
    %203 = vmatpush1.msra.mxu0 0.0
    %204 = vmatprep.subr.mxu0 0.0
    %205 = vmatpush1.msra.mxu0 0.0
    %206 = vmatprep.subr.mxu0 0.0
    %207 = vmatpush1.msra.mxu0 0.0
    %208 = vmatprep.mubr.f32.mxu0 0.0
    %209 = vmatmul.mubr.f32.gmra.mrb[0].mxu0 %v139
    %v210 = vpop.f32.mrb[0].mxu0
    %v211 = vadd.f32 %v136, %v210
    %v212 = vpop.f32.mrb[0].mxu0
    %213 = vmatprep.mubr.f32.mxu0 0.0
    %214 = vmatmul.mubr.f32.gmra.mrb[0].mxu0 %v142
    %v215 = vpop.f32.mrb[0].mxu0
    %v216 = vadd.f32 %v136, %v215
    %v217 = vpop.f32.mrb[0].mxu0
    %218 = vdwg.mxu0
    %v219 = vmul.f32 %v211, 0.5
    %v220 = vmul.f32 %v216, 0.5
    %v221 = vmul.f32 %v211, 0.70710677
    %v222 = vmul.f32 %v216, 0.70710677
    %v223 = verf.f32.pop %v221
    %v224 = verf.f32.pop %v222
    %v225 = vadd.f32 %v223, 1.0
    %v226 = vadd.f32 %v224, 1.0
    %v227 = vmul.f32 %v219, %v225
    %v228 = vmul.f32 %v220, %v226
    %v229 = vld [vmem:[%s7] sm:$0xff]
    %v230 = vld [vmem:[%s7 + $0x8] sm:$0xff]
    %v231 = vld [vmem:[%s7 + $0x10] sm:$0xff]
    %v232 = vld [vmem:[%s7 + $0x18] sm:$0xff]
    %v233 = vld [vmem:[%s7 + $0x20] sm:$0xff]
    %v234 = vld [vmem:[%s7 + $0x28] sm:$0xff]
    %v235 = vld [vmem:[%s7 + $0x30] sm:$0xff]
    %v236 = vld [vmem:[%s7 + $0x38] sm:$0xff]
    %v237 = vld [vmem:[%s7 + $0x40] sm:$0xff]
    %v238 = vld [vmem:[%s7 + $0x48] sm:$0xff]
    %v239 = vld [vmem:[%s7 + $0x50] sm:$0xff]
    %v240 = vld [vmem:[%s7 + $0x58] sm:$0xff]
    %v241 = vld [vmem:[%s7 + $0x60] sm:$0xff]
    %v242 = vld [vmem:[%s7 + $0x68] sm:$0xff]
    %v243 = vld [vmem:[%s7 + $0x70] sm:$0xff]
    %v244 = vld [vmem:[%s7 + $0x78] sm:$0xff]
    %v245 = vld [vmem:[%s8] sm:$0x1]
    %v247 = vlaneseq
    %v248 = vshrl.u32 %v247, 7
    %v249 = vsub.s32 0, %v248
    %v250 = vrot.slane %v245, %v249
    %252 = vmatprep.subr.mxu0 0.0
    %253 = vmatpush1.msra.mxu0 %v229
    %254 = vmatprep.subr.mxu0 0.0
    %255 = vmatpush1.msra.mxu0 %v230
    %256 = vmatprep.subr.mxu0 0.0
    %257 = vmatpush1.msra.mxu0 %v231
    %258 = vmatprep.subr.mxu0 0.0
    %259 = vmatpush1.msra.mxu0 %v232
    %260 = vmatprep.subr.mxu0 0.0
    %261 = vmatpush1.msra.mxu0 %v233
    %262 = vmatprep.subr.mxu0 0.0
    %263 = vmatpush1.msra.mxu0 %v234
    %264 = vmatprep.subr.mxu0 0.0
    %265 = vmatpush1.msra.mxu0 %v235
    %266 = vmatprep.subr.mxu0 0.0
    %267 = vmatpush1.msra.mxu0 %v236
    %268 = vmatprep.subr.mxu0 0.0
    %269 = vmatpush1.msra.mxu0 %v237
    %270 = vmatprep.subr.mxu0 0.0
    %271 = vmatpush1.msra.mxu0 %v238
    %272 = vmatprep.subr.mxu0 0.0
    %273 = vmatpush1.msra.mxu0 %v239
    %274 = vmatprep.subr.mxu0 0.0
    %275 = vmatpush1.msra.mxu0 %v240
    %276 = vmatprep.subr.mxu0 0.0
    %277 = vmatpush1.msra.mxu0 %v241
    %278 = vmatprep.subr.mxu0 0.0
    %279 = vmatpush1.msra.mxu0 %v242
    %280 = vmatprep.subr.mxu0 0.0
    %281 = vmatpush1.msra.mxu0 %v243
    %282 = vmatprep.subr.mxu0 0.0
    %283 = vmatpush1.msra.mxu0 %v244
    %284 = vmatprep.subr.mxu0 0.0
    %285 = vmatpush1.msra.mxu0 0.0
    %286 = vmatprep.subr.mxu0 0.0
    %287 = vmatpush1.msra.mxu0 0.0
    %288 = vmatprep.subr.mxu0 0.0
    %289 = vmatpush1.msra.mxu0 0.0
    %290 = vmatprep.subr.mxu0 0.0
    %291 = vmatpush1.msra.mxu0 0.0
    %292 = vmatprep.subr.mxu0 0.0
    %293 = vmatpush1.msra.mxu0 0.0
    %294 = vmatprep.subr.mxu0 0.0
    %295 = vmatpush1.msra.mxu0 0.0
    %296 = vmatprep.subr.mxu0 0.0
    %297 = vmatpush1.msra.mxu0 0.0
    %298 = vmatprep.subr.mxu0 0.0
    %299 = vmatpush1.msra.mxu0 0.0
    %300 = vmatprep.subr.mxu0 0.0
    %301 = vmatpush1.msra.mxu0 0.0
    %302 = vmatprep.subr.mxu0 0.0
    %303 = vmatpush1.msra.mxu0 0.0
    %304 = vmatprep.subr.mxu0 0.0
    %305 = vmatpush1.msra.mxu0 0.0
    %306 = vmatprep.subr.mxu0 0.0
    %307 = vmatpush1.msra.mxu0 0.0
    %308 = vmatprep.subr.mxu0 0.0
    %309 = vmatpush1.msra.mxu0 0.0
    %310 = vmatprep.subr.mxu0 0.0
    %311 = vmatpush1.msra.mxu0 0.0
    %312 = vmatprep.subr.mxu0 0.0
    %313 = vmatpush1.msra.mxu0 0.0
    %314 = vmatprep.subr.mxu0 0.0
    %315 = vmatpush1.msra.mxu0 0.0
    %316 = vmatprep.mubr.f32.mxu0 0.0
    %317 = vmatmul.mubr.f32.gmra.mrb[0].mxu0 %v227
    %v318 = vpop.f32.mrb[0].mxu0
    %v319 = vadd.f32 %v250, %v318
    %v320 = vpop.f32.mrb[0].mxu0
    %321 = vmatprep.mubr.f32.mxu0 0.0
    %322 = vmatmul.mubr.f32.gmra.mrb[0].mxu0 %v228
    %v323 = vpop.f32.mrb[0].mxu0
    %v324 = vadd.f32 %v250, %v323
    %v325 = vpop.f32.mrb[0].mxu0
    %326 = vdwg.mxu0
    %v327 = vadd.f32 %v319, %v81
    %v328 = vadd.f32 %v324, %v82
    %329 = vst.msk [vmem:[#allocation2] sm:$0xff] %vm37, %v327
    %330 = vst.msk [vmem:[#allocation2 + $0x8] sm:$0xff] %vm37, %v328
    // Predicated region
    $region38: #{tpu_custom_call.1} parent=1 // pred_check
      _
    $region39: #{tpu_custom_call.1} parent=1 // pred_check_branch
      %332 = sbr.rel (0) target = $region41
    $region40: #{tpu_custom_call.1} parent=1 // pred_region
      %s334 = ssub.s32 256, 256
      %335 = vsyncadd [#allocation3], %s334
      %s336 = sshll.u32 [#allocation2], 4
      %s337 = int_to_ptr.vmem [resolvable:$true] %s336
      %342 = dma.vmem_to_hbm [thread:$0]  %s337, 256, %s9, [#allocation3], 128, 128, 8
    $region41: #{tpu_custom_call.1} parent=1 // pred_fallthru
      _
    // Predicated region
    $region42: #{tpu_custom_call.1} parent=1 // pred_check
      _
    $region43: #{tpu_custom_call.1} parent=1 // pred_check_branch
      %344 = sbr.rel (0) target = $region45
    $region44: #{tpu_custom_call.1} parent=1 // pred_region
      %345 = dma.done [#allocation3], 256
    $region45: #{tpu_custom_call.1} parent=1 // pred_fallthru
      _
    %346 = vsyncpa [#allocation3], 1

</llo_original>
